<compile_context>
chip_gen: v7x
topology: tpu7x:2x2x1
jax: 0.10.0
libtpu: 0.0.40
codegen_flags: <defaults>
</compile_context>

<pallas_src>
import functools

import jax
import jax.numpy as jnp
from jax.experimental import pallas as pl
from jax.experimental.pallas import tpu as pltpu


# Conservative double-buffered VMEM budget (fits v5e's 16 MiB default scoped
# limit with headroom; v6e/v7x have more, but this keeps one code path safe).
_VMEM_BUDGET = 8 * 1024 * 1024


def _round_up(x: int, m: int) -> int:
    return ((x + m - 1) // m) * m


def _equal_linear_kernel(x_ref, w_ref, b_ref, o_ref, *, lr_mul: float):
    """Computes one (block_b, block_n) output tile.

    x_ref: (block_b, dim)      activation tile
    w_ref: (block_n, dim)      weight tile, native PyTorch layout
    b_ref: (1, block_n)        f32 bias tile
    o_ref: (block_b, block_n)  output tile
    """
    x = x_ref[...]
    w = w_ref[...]
    if x.dtype != w.dtype:
        # VMEM-local VPU cast (e.g. f32 activations -> bf16 MXU operands);
        # no extra HBM traffic, accumulation below stays f32.
        x = x.astype(w.dtype)
    # [B, K] x [N, K] contracting K  ==  x @ w.T  (trans_b matmul on the MXU).
    acc = jax.lax.dot_general(
        x, w,
        dimension_numbers=(((1,), (1,)), ((), ())),
        preferred_element_type=jnp.float32)
    # Epilogue on the small output tile only (f32): bias add + lr_mul fold.
    acc = (acc + b_ref[...].astype(jnp.float32)) * lr_mul
    o_ref[...] = acc.astype(o_ref.dtype)


def prepare_equal_linear_params(weight, bias=None, compute_dtype=jnp.bfloat16):
    """One-time parameter prep (do this OUTSIDE the per-forward path).

    Casts the weight to the MXU compute dtype once so the per-call path never
    reads + rewrites the full weight through HBM.  Bias stays f32 (the
    epilogue is f32 regardless).
    """
    w = weight.astype(compute_dtype)
    b = None if bias is None else bias.astype(jnp.float32)
    return w, b


def _pick_blocks(batch, dim, dim_out, x_bytes, w_bytes, out_bytes):
    # Sublane-packing multiple of the narrowest dtype in play
    # (8 for f32, 16 for bf16, 32 for int8/fp8).
    sub = max(8, 32 // min(x_bytes, w_bytes, out_bytes))

    def footprint(bb, bn):
        # double-buffered x / W / bias tiles + output tile + f32 epilogue temp
        return (2 * (bb * dim * x_bytes + bn * dim * w_bytes + bn * 4
                     + bb * bn * out_bytes) + bb * bn * 4)

    # Small-problem fast path: whole dim_out and whole batch (<= 512 rows) so
    # the grid collapses to 1-2 steps; only tile when VMEM says so.
    block_b = batch if batch <= 512 else 512
    block_n = dim_out
    while block_n > 128 and footprint(block_b, block_n) > _VMEM_BUDGET:
        block_n = max(128, _round_up(block_n // 2, 128))   # lane-dense tiles
    while block_b > sub and footprint(block_b, block_n) > _VMEM_BUDGET:
        block_b = max(sub, _round_up(block_b // 2, sub))
    return block_b, block_n


def equal_linear(x, weight, bias=None, lr_mul=1.0, *,
                 block_b=None, block_n=None):
    """Pallas EqualLinear forward: lr_mul * (x @ weight.T + bias).

    x:      (..., dim)
    weight: (dim_out, dim) -- native PyTorch layout, used as-is (no per-call
            transpose/pad/cast).  For bf16 MXU operands, cast it once via
            prepare_equal_linear_params().
    bias:   (dim_out,) or None
    """
    orig_shape = x.shape
    dim = orig_shape[-1]
    x2 = x.reshape(-1, dim)
    batch = x2.shape[0]

    dim_out, dim_w = weight.shape
    assert dim == dim_w, (dim, dim_w)

    out_dtype = x.dtype
    if bias is None:
        bias = jnp.zeros((dim_out,), dtype=jnp.float32)
    bias2d = bias.reshape(1, dim_out).astype(jnp.float32)

    x_bytes = jnp.dtype(x2.dtype).itemsize
    w_bytes = jnp.dtype(weight.dtype).itemsize
    o_bytes = jnp.dtype(out_dtype).itemsize

    auto_b, auto_n = _pick_blocks(batch, dim, dim_out, x_bytes, w_bytes, o_bytes)
    block_b = auto_b if block_b is None else min(block_b, batch)
    block_n = auto_n if block_n is None else min(block_n, dim_out)

    n_tiles = pl.cdiv(dim_out, block_n)
    b_tiles = pl.cdiv(batch, block_b)

    # Adaptive grid order: the larger operand's tile is resident across the
    # fast (inner) axis and is read from HBM only once; the smaller operand
    # is the one that gets re-fetched.
    if batch > dim_out:
        grid = (b_tiles, n_tiles)                 # B outer (slow), N inner
        x_map = lambda b, n: (b, 0)
        w_map = lambda b, n: (n, 0)
        bias_map = lambda b, n: (0, n)
        out_map = lambda b, n: (b, n)
    else:
        grid = (n_tiles, b_tiles)                 # N outer (slow), B inner
        x_map = lambda n, b: (b, 0)
        w_map = lambda n, b: (n, 0)
        bias_map = lambda n, b: (0, n)
        out_map = lambda n, b: (b, n)

    kernel = functools.partial(_equal_linear_kernel, lr_mul=float(lr_mul))

    out = pl.pallas_call(
        kernel,
        out_shape=jax.ShapeDtypeStruct((batch, dim_out), out_dtype),
        grid_spec=pltpu.PrefetchScalarGridSpec(
            num_scalar_prefetch=0,
            grid=grid,
            in_specs=[
                pl.BlockSpec((block_b, dim), x_map),    # activation tile
                pl.BlockSpec((block_n, dim), w_map),    # weight tile (native)
                pl.BlockSpec((1, block_n), bias_map),   # bias tile
            ],
            out_specs=pl.BlockSpec((block_b, block_n), out_map),
        ),
        compiler_params=pltpu.CompilerParams(
            dimension_semantics=("parallel", "parallel")),
    )(x2, weight, bias2d)

    return out.reshape(*orig_shape[:-1], dim_out)


if __name__ == "__main__":
    key = jax.random.PRNGKey(0)
    kx, kw, kb, kx2, kw2, kb2, kx3, kw3, kb3 = jax.random.split(key, 9)

    # --- Test 1: small module-default shapes, f32 strict ---------------------
    batch, dim, dim_out = 8, 32, 64
    lr_mul = 0.5
    x = jax.random.normal(kx, (batch, dim), dtype=jnp.float32)
    weight = jax.random.normal(kw, (dim_out, dim), dtype=jnp.float32)
    bias = jax.random.normal(kb, (dim_out,), dtype=jnp.float32)

    out = jax.block_until_ready(equal_linear(x, weight, bias, lr_mul=lr_mul))
    ref = x @ (weight * lr_mul).T + (bias * lr_mul)[None, :]
    assert out.shape == (batch, dim_out)
    assert jnp.allclose(out, ref, atol=1e-5, rtol=1e-5)

    # --- Test 2: ragged dim_out + leading dims (no padding anywhere) ---------
    b0, b1, dim2, dim_out2 = 2, 10, 32, 200
    x2 = jax.random.normal(kx2, (b0, b1, dim2), dtype=jnp.float32)
    w2 = jax.random.normal(kw2, (dim_out2, dim2), dtype=jnp.float32)
    bi2 = jax.random.normal(kb2, (dim_out2,), dtype=jnp.float32)

    out2 = jax.block_until_ready(equal_linear(x2, w2, bi2, lr_mul=0.1))
    ref2 = x2 @ (w2 * 0.1).T + (bi2 * 0.1)[None, None, :]
    assert out2.shape == (b0, b1, dim_out2)
    assert jnp.allclose(out2, ref2, atol=1e-5, rtol=1e-5)

    # --- Test 3: bf16 production path (one-time weight prep) + ragged tiling -
    b3, dim3, dim_out3, lr3 = 300, 256, 192, 2.0
    x3 = jax.random.normal(kx3, (b3, dim3), dtype=jnp.float32)
    w3 = jax.random.normal(kw3, (dim_out3, dim3), dtype=jnp.float32)
    bi3 = jax.random.normal(kb3, (dim_out3,), dtype=jnp.float32)
    w3p, bi3p = prepare_equal_linear_params(w3, bi3)   # bf16 weight, ONCE

    out3 = jax.block_until_ready(
        equal_linear(x3, w3p, bi3p, lr_mul=lr3, block_b=128, block_n=128))
    x3_q = x3.astype(jnp.bfloat16).astype(jnp.float32)  # what the kernel sees
    w3_q = w3p.astype(jnp.float32)
    ref3 = (x3_q @ w3_q.T + bi3[None, :]) * lr3
    assert out3.shape == (b3, dim_out3)
    assert jnp.allclose(out3, ref3, atol=2e-2, rtol=2e-2)

    print("KERNEL_OK")
</pallas_src>

<mosaic_0001>
module attributes {stable_mosaic.version = 11 : i64} {
  func.func @_equal_linear_kernel(%arg0: i32, %arg1: i32, %arg2: memref<8x32xf32, #tpu.memory_space<vmem>>, %arg3: memref<64x32xf32, #tpu.memory_space<vmem>>, %arg4: memref<1x64xf32, #tpu.memory_space<vmem>>, %arg5: memref<8x64xf32, #tpu.memory_space<vmem>>) attributes {dimension_semantics = [#tpu.dimension_semantics<parallel>, #tpu.dimension_semantics<parallel>], iteration_bounds = array<i64: 1, 1>, scalar_prefetch = 0 : i64, scratch_operands = 0 : i64, tpu.core_type = #tpu.core_type<tc>, window_params = [{transform_indices = @transform_0, window_bounds = array<i64: 8, 32>}, {transform_indices = @transform_1, window_bounds = array<i64: 64, 32>}, {transform_indices = @transform_2, window_bounds = array<i64: 1, 64>}, {transform_indices = @transform_3, window_bounds = array<i64: 8, 64>}]} {
    %c0 = arith.constant 0 : index
    %c0_0 = arith.constant 0 : index
    %0 = vector.load %arg2[%c0, %c0_0] : memref<8x32xf32, #tpu.memory_space<vmem>>, vector<8x32xf32>
    %c0_1 = arith.constant 0 : index
    %c0_2 = arith.constant 0 : index
    %1 = vector.load %arg3[%c0_1, %c0_2] : memref<64x32xf32, #tpu.memory_space<vmem>>, vector<64x32xf32>
    %cst = arith.constant dense<0.000000e+00> : vector<8x64xf32>
    %2 = tpu.matmul %0, %1, %cst {dimension_numbers = #tpu.dot_dimension_numbers<[1], [1], [0], [0], [0, 0, 1, 0], [], []>} : vector<8x32xf32>, vector<64x32xf32>, vector<8x64xf32> -> vector<8x64xf32>
    %c0_3 = arith.constant 0 : index
    %c0_4 = arith.constant 0 : index
    %3 = vector.load %arg4[%c0_3, %c0_4] : memref<1x64xf32, #tpu.memory_space<vmem>>, vector<1x64xf32>
    %4 = vector.broadcast %3 : vector<1x64xf32> to vector<8x64xf32>
    %5 = arith.addf %2, %4 : vector<8x64xf32>
    %cst_5 = arith.constant 5.000000e-01 : f32
    %6 = vector.broadcast %cst_5 : f32 to vector<8x64xf32>
    %7 = arith.mulf %5, %6 : vector<8x64xf32>
    %c0_6 = arith.constant 0 : index
    %c0_7 = arith.constant 0 : index
    %8 = vector.load %arg5[%c0_6, %c0_7] : memref<8x64xf32, #tpu.memory_space<vmem>>, vector<8x64xf32>
    tpu.vector_store %arg5[%c0_6, %c0_7], %7 {strides = array<i32>} : memref<8x64xf32, #tpu.memory_space<vmem>>, vector<8x64xf32>,
    return
  }
  func.func @transform_0(%arg0: i32, %arg1: i32) -> (i32, i32) {
    %c0_i32 = arith.constant 0 : i32
    %c0_i32_0 = arith.constant 0 : i32
    return %arg1, %c0_i32 : i32, i32
  }
  func.func @transform_1(%arg0: i32, %arg1: i32) -> (i32, i32) {
    %c0_i32 = arith.constant 0 : i32
    %c0_i32_0 = arith.constant 0 : i32
    return %arg0, %c0_i32 : i32, i32
  }
  func.func @transform_2(%arg0: i32, %arg1: i32) -> (i32, i32) {
    %c0_i32 = arith.constant 0 : i32
    %c0_i32_0 = arith.constant 0 : i32
    return %c0_i32, %arg0 : i32, i32
  }
  func.func @transform_3(%arg0: i32, %arg1: i32) -> (i32, i32) {
    %c0_i32 = arith.constant 0 : i32
    return %arg1, %arg0 : i32, i32
  }
}

</mosaic_0001>

<llo_original>
// kernel: tpu_custom_call.1
$region0: #{tpu_custom_call.1}
  #allocation0 [shape = 'u32[]', space=smem, size = 0x4, offset = 0x4, fixed_abs, tag = 'smem constant byte address 0x4 - core index']
  #allocation1 [shape = 'u32[144,128]{1,0:T(1,128)}', space=vmem, size = 0x12000, scoped, tag = 'internal scratch']
  %s0 = inlined_call_operand.vmem [shape: f32[8,32], index: 0, kind: input, shape index: {}]
  %s1 = inlined_call_operand.vmem [shape: f32[64,32], index: 1, kind: input, shape index: {}]
  %s2 = inlined_call_operand.vmem [shape: f32[1,64], index: 2, kind: input, shape index: {}]
  %s3 = inlined_call_operand.hbm [shape: f32[8,64], index: 3, kind: output, shape index: {}]
  %s4 = sld [smem:[#allocation0]]
  $region22: #{tpu_custom_call.1} parent=0
    _
  %s6 = ssub.s32 1, %s4
  %s7 = scalar_select 0, %s6, %s4
  $region1: #{tpu_custom_call.1} parent=0
    #allocation2 [shape = 'u8[4096]{0}', space=vmem, size = 0x1000, scoped, tag = 'output window, operand 0, single buffered']
    #allocation3 [shape = 's32[1]{0}', space=sflag, size = 0x4, scoped, tag = 'scoped memory for tpu_custom_call.1']
    %8 = vsyncpa [#allocation3], 0
    // Predicated region
    $region2: #{tpu_custom_call.1} parent=1 // pred_check
      _
    $region3: #{tpu_custom_call.1} parent=1 // pred_check_branch
      %10 = sbr.rel (0) target = $region5
    $region4: #{tpu_custom_call.1} parent=1 // pred_region
      _
    $region5: #{tpu_custom_call.1} parent=1 // pred_fallthru
      _
    // Predicated region
    $region6: #{tpu_custom_call.1} parent=1 // pred_check
      _
    $region7: #{tpu_custom_call.1} parent=1 // pred_check_branch
      %12 = sbr.rel (0) target = $region9
    $region8: #{tpu_custom_call.1} parent=1 // pred_region
      _
    $region9: #{tpu_custom_call.1} parent=1 // pred_fallthru
      _
    // Predicated region
    $region10: #{tpu_custom_call.1} parent=1 // pred_check
      _
    $region11: #{tpu_custom_call.1} parent=1 // pred_check_branch
      %14 = sbr.rel (0) target = $region13
    $region12: #{tpu_custom_call.1} parent=1 // pred_region
      _
    $region13: #{tpu_custom_call.1} parent=1 // pred_fallthru
      _
    %v15 = vld [vmem:[%s0] sm:$0xff]
    %v16 = vld [vmem:[%s1] sm:$0xff]
    %v17 = vld [vmem:[%s1 + $0x8] sm:$0xff]
    %v18 = vld [vmem:[%s1 + $0x10] sm:$0xff]
    %v19 = vld [vmem:[%s1 + $0x18] sm:$0xff]
    %v20 = vld [vmem:[%s1 + $0x20] sm:$0xff]
    %v21 = vld [vmem:[%s1 + $0x28] sm:$0xff]
    %v22 = vld [vmem:[%s1 + $0x30] sm:$0xff]
    %v23 = vld [vmem:[%s1 + $0x38] sm:$0xff]
    %v24 = vld [vmem:[%s2] sm:$0x1]
    %v26 = vlaneseq
    %v27 = vshrl.u32 %v26, 7
    %v28 = vsub.s32 0, %v27
    %v29 = vrot.slane %v24, %v28
    %vm31 = vcmask 261120
    %v33 = vsel %vm31, %v15, 0
    %v36 = vsel %vm31, %v16, 0
    %v39 = vsel %vm31, %v17, 0
    %v42 = vsel %vm31, %v18, 0
    %v45 = vsel %vm31, %v19, 0
    %v48 = vsel %vm31, %v20, 0
    %v51 = vsel %vm31, %v21, 0
    %v54 = vsel %vm31, %v22, 0
    %v57 = vsel %vm31, %v23, 0
    %59 = vmatprep.subr.mxu0 0.0
    %60 = vmatpush1.xpose.msra.mxu0 %v36
    %61 = vmatprep.subr.mxu0 0.0
    %62 = vmatpush1.xpose.msra.mxu0 %v39
    %63 = vmatprep.subr.mxu0 0.0
    %64 = vmatpush1.xpose.msra.mxu0 %v42
    %65 = vmatprep.subr.mxu0 0.0
    %66 = vmatpush1.xpose.msra.mxu0 %v45
    %67 = vmatprep.subr.mxu0 0.0
    %68 = vmatpush1.xpose.msra.mxu0 %v48
    %69 = vmatprep.subr.mxu0 0.0
    %70 = vmatpush1.xpose.msra.mxu0 %v51
    %71 = vmatprep.subr.mxu0 0.0
    %72 = vmatpush1.xpose.msra.mxu0 %v54
    %73 = vmatprep.subr.mxu0 0.0
    %74 = vmatpush1.xpose.msra.mxu0 %v57
    %75 = vmatprep.subr.mxu0 0.0
    %76 = vmatpush1.xpose.msra.mxu0 0.0
    %77 = vmatprep.subr.mxu0 0.0
    %78 = vmatpush1.xpose.msra.mxu0 0.0
    %79 = vmatprep.subr.mxu0 0.0
    %80 = vmatpush1.xpose.msra.mxu0 0.0
    %81 = vmatprep.subr.mxu0 0.0
    %82 = vmatpush1.xpose.msra.mxu0 0.0
    %83 = vmatprep.subr.mxu0 0.0
    %84 = vmatpush1.xpose.msra.mxu0 0.0
    %85 = vmatprep.subr.mxu0 0.0
    %86 = vmatpush1.xpose.msra.mxu0 0.0
    %87 = vmatprep.subr.mxu0 0.0
    %88 = vmatpush1.xpose.msra.mxu0 0.0
    %89 = vmatprep.subr.mxu0 0.0
    %90 = vmatpush1.xpose.msra.mxu0 0.0
    %91 = vmatprep.subr.mxu0 0.0
    %92 = vmatpush1.xpose.msra.mxu0 0.0
    %93 = vmatprep.subr.mxu0 0.0
    %94 = vmatpush1.xpose.msra.mxu0 0.0
    %95 = vmatprep.subr.mxu0 0.0
    %96 = vmatpush1.xpose.msra.mxu0 0.0
    %97 = vmatprep.subr.mxu0 0.0
    %98 = vmatpush1.xpose.msra.mxu0 0.0
    %99 = vmatprep.subr.mxu0 0.0
    %100 = vmatpush1.xpose.msra.mxu0 0.0
    %101 = vmatprep.subr.mxu0 0.0
    %102 = vmatpush1.xpose.msra.mxu0 0.0
    %103 = vmatprep.subr.mxu0 0.0
    %104 = vmatpush1.xpose.msra.mxu0 0.0
    %105 = vmatprep.subr.mxu0 0.0
    %106 = vmatpush1.xpose.msra.mxu0 0.0
    %107 = vmatprep.subr.mxu0 0.0
    %108 = vmatpush1.xpose.msra.mxu0 0.0
    %109 = vmatprep.subr.mxu0 0.0
    %110 = vmatpush1.xpose.msra.mxu0 0.0
    %111 = vmatprep.subr.mxu0 0.0
    %112 = vmatpush1.xpose.msra.mxu0 0.0
    %113 = vmatprep.subr.mxu0 0.0
    %114 = vmatpush1.xpose.msra.mxu0 0.0
    %115 = vmatprep.subr.mxu0 0.0
    %116 = vmatpush1.xpose.msra.mxu0 0.0
    %117 = vmatprep.subr.mxu0 0.0
    %118 = vmatpush1.xpose.msra.mxu0 0.0
    %119 = vmatprep.subr.mxu0 0.0
    %120 = vmatpush1.xpose.msra.mxu0 0.0
    %121 = vmatprep.subr.mxu0 0.0
    %122 = vmatpush1.xpose.msra.mxu0 0.0
    %123 = vmatprep.mubr.f32.mxu0 0.0
    %124 = vmatmul.mubr.f32.gmra.mrb[0].mxu0 %v33
    %v125 = vpop.f32.mrb[0].mxu0
    %v126 = vadd.f32 %v29, %v125
    %v127 = vpop.f32.mrb[0].mxu0
    %128 = vdwg.mxu0
    %v129 = vmul.f32 %v126, 0.5
    %vm130 = vcmask 523264
    %131 = vst.msk [vmem:[#allocation2] sm:$0xff] %vm130, %v129
    // Predicated region
    $region14: #{tpu_custom_call.1} parent=1 // pred_check
      _
    $region15: #{tpu_custom_call.1} parent=1 // pred_check_branch
      %133 = sbr.rel (0) target = $region17
    $region16: #{tpu_custom_call.1} parent=1 // pred_region
      %s135 = ssub.s32 128, 128
      %136 = vsyncadd [#allocation3], %s135
      %s138 = sshll.u32 [#allocation2], 4
      %s139 = int_to_ptr.vmem [resolvable:$true] %s138
      %141 = dma.vmem_to_hbm [thread:$0]  %s139, 128, %s3, [#allocation3]
    $region17: #{tpu_custom_call.1} parent=1 // pred_fallthru
      _
    // Predicated region
    $region18: #{tpu_custom_call.1} parent=1 // pred_check
      _
    $region19: #{tpu_custom_call.1} parent=1 // pred_check_branch
      %143 = sbr.rel (0) target = $region21
    $region20: #{tpu_custom_call.1} parent=1 // pred_region
      %144 = dma.done [#allocation3], 128
    $region21: #{tpu_custom_call.1} parent=1 // pred_fallthru
      _
    %145 = vsyncpa [#allocation3], 1

</llo_original>
